<compile_context>
chip_gen: v5e
topology: v5e:2x2
jax: 0.10.0
libtpu: 0.0.40
codegen_flags: <defaults>
</compile_context>

<pallas_src>
from typing import List

import jax
import jax.numpy as jnp
from jax.experimental import pallas as pl
from jax.experimental.pallas import tpu as pltpu


def _round_up(x: int, m: int) -> int:
    return ((x + m - 1) // m) * m


# ----------------------------------------------------------------------------
# Pallas kernel: fused 2-layer MLP (bf16 matmuls, f32 accumulation)
# ----------------------------------------------------------------------------
def _mlp_kernel(x_ref, w1_ref, b1_ref, w2_ref, b2_ref, o_ref):
    # Fused cast: x arrives as f32, cast to bf16 on the VPU (free slot) just
    # before the MXU pass — avoids a separate XLA cast pass over HBM.
    x = x_ref[...].astype(jnp.bfloat16)
    # (TILE_B, D_in) @ (D_in, H) -> f32 accumulator on the MXU.
    h = jnp.dot(x, w1_ref[...], preferred_element_type=jnp.float32)
    h = jnp.maximum(h + b1_ref[...], 0.0)                      # bias + ReLU (VPU, f32)
    # Cast hidden activation to bf16 for the second MXU pass.
    y = jnp.dot(h.astype(w2_ref.dtype), w2_ref[...],
                preferred_element_type=jnp.float32)
    o_ref[...] = (y + b2_ref[...]).astype(o_ref.dtype)


def _pick_tile_b(batch: int, requested: int) -> int:
    """Batch-tile selection.

    Tiny B  -> single full-array block (legal: equals the full dim).
    Mid/large B -> cap so the grid has >= 2 steps (v7x: 2 TensorCores),
    never exceeding the requested tile.
    """
    if batch <= 8:
        return batch
    half = _round_up(pl.cdiv(batch, 2), 8)
    return max(8, min(requested, half))


def _fused_mlp(x_f32, w1_bf16, b1_f32, w2_bf16, b2_f32, *, tile_b: int = 1024):
    """Batched pallas_call: grid over batch tiles, weights resident in VMEM.

    x_f32:   (B, D_in)    f32   (cast to bf16 inside the kernel)
    w1_bf16: (D_in, H)    bf16
    b1_f32:  (1, H)       f32
    w2_bf16: (H, D_out)   bf16  (D_out padded to a multiple of 128 by caller)
    b2_f32:  (1, D_out)   f32
    returns: (B, D_out)   f32
    """
    B, d_in = x_f32.shape
    h_dim, d_out = w2_bf16.shape

    tile_b = _pick_tile_b(B, tile_b)
    grid = (pl.cdiv(B, tile_b),)

    # Advisory cost estimate (true B, no padded feature dims).
    flops = 2 * B * (d_in * h_dim + h_dim * d_out)
    bytes_accessed = (
        x_f32.size * 4
        + w1_bf16.size * 2 + w2_bf16.size * 2
        + b1_f32.size * 4 + b2_f32.size * 4
        + B * d_out * 4
    )

    # VMEM budget from actual buffer sizes (resident weights + double-buffered
    # x/out tiles + hidden activation), 2x headroom, clamped to [16, 64] MiB so
    # it stays inside v7x's 64 MiB physical VMEM.
    resident = (w1_bf16.size * 2 + w2_bf16.size * 2
                + b1_f32.size * 4 + b2_f32.size * 4)
    streamed = 2 * tile_b * d_in * 4 + 2 * tile_b * d_out * 4
    hidden = tile_b * h_dim * 4
    vmem_limit = int(min(max(2 * (resident + streamed + hidden), 16 << 20), 64 << 20))

    return pl.pallas_call(
        _mlp_kernel,
        out_shape=jax.ShapeDtypeStruct((B, d_out), jnp.float32),
        grid_spec=pl.GridSpec(
            grid=grid,
            in_specs=[
                # Batch-tiled activations: streamed / double-buffered by Pallas.
                # Last dim = full array dim (d_in) -> legal without 128-padding.
                pl.BlockSpec((tile_b, d_in), lambda i: (i, 0)),
                # Weights / biases: same block every grid step -> VMEM-resident.
                pl.BlockSpec((d_in, h_dim), lambda i: (0, 0)),
                pl.BlockSpec((1, h_dim), lambda i: (0, 0)),
                pl.BlockSpec((h_dim, d_out), lambda i: (0, 0)),
                pl.BlockSpec((1, d_out), lambda i: (0, 0)),
            ],
            out_specs=pl.BlockSpec((tile_b, d_out), lambda i: (i, 0)),
        ),
        compiler_params=pltpu.CompilerParams(
            # Batch tiles are independent -> shard across TensorCores (v7x).
            dimension_semantics=("parallel",),
            vmem_limit_bytes=vmem_limit,
        ),
        cost_estimate=pl.CostEstimate(
            flops=flops, transcendentals=0, bytes_accessed=bytes_accessed
        ),
    )(x_f32, w1_bf16, b1_f32, w2_bf16, b2_f32)


# ----------------------------------------------------------------------------
# NeuracoreModel equivalent (concrete instantiation of the abstract base)
# ----------------------------------------------------------------------------
class NeuracoreModelPallas:
    SUPPORTED_INPUT_TYPES = frozenset({"JOINT_POSITIONS"})
    SUPPORTED_OUTPUT_TYPES = frozenset({"JOINT_TARGET_POSITIONS"})

    LANE = 128  # TPU vreg lane width: output feature dim is padded to this.

    def __init__(
        self,
        input_data_types: List[str],
        output_data_types: List[str],
        dataset_data_types: List[str],
        state_dim: int,
        action_dim: int,
        output_prediction_horizon: int,
        hidden_dim: int = 32,
        batch_tile: int = 1024,
    ):
        # --- _validate_input_output_types (pure-Python, identical semantics) ---
        req_in, req_out = set(input_data_types), set(output_data_types)
        in_dataset = set(dataset_data_types)
        if not req_in.issubset(in_dataset):
            raise ValueError(
                f"Requested input data types not in dataset: {req_in - in_dataset}"
            )
        if not req_in.issubset(self.SUPPORTED_INPUT_TYPES):
            raise ValueError(
                "Requested input data types not supported by model: "
                f"{req_in - self.SUPPORTED_INPUT_TYPES}"
            )
        if not req_out.issubset(self.SUPPORTED_OUTPUT_TYPES):
            raise ValueError(
                "Requested output data types not supported by model: "
                f"{req_out - self.SUPPORTED_OUTPUT_TYPES}"
            )
        if not req_out.issubset(in_dataset):
            raise ValueError(
                f"Requested output data types not in dataset: {req_out - in_dataset}"
            )

        # Device auto-selection: JAX default backend (TPU) stands in for
        # torch.device('cuda' if available else 'cpu').
        self.device = jax.devices()[0]
        self.output_prediction_horizon = output_prediction_horizon
        self.state_dim = state_dim
        self.action_dim = action_dim
        self.hidden_dim = hidden_dim
        self.batch_tile = batch_tile

        d_out = action_dim * output_prediction_horizon
        self._d_out = d_out
        # Lane-dense output: pad d_out up to a multiple of 128 (unmasked vst);
        # the demo's d_out = 128 already, so this is a no-op there.
        self._d_out_p = _round_up(d_out, self.LANE)

        # Master f32 parameters (deterministic, shapes implied by the forward).
        key = jax.random.PRNGKey(0)
        k1, k2, k3, k4 = jax.random.split(key, 4)
        self.w1 = jax.random.normal(k1, (state_dim, hidden_dim), jnp.float32) * 0.05
        self.b1 = jax.random.normal(k2, (1, hidden_dim), jnp.float32) * 0.01
        self.w2 = jax.random.normal(k3, (hidden_dim, d_out), jnp.float32) * 0.05
        self.b2 = jax.random.normal(k4, (1, d_out), jnp.float32) * 0.01

        # Kernel parameters: bf16 weights (precision tradeoff, documented),
        # f32 biases, zero padding only on the output feature dim.
        w2_p = jnp.zeros((hidden_dim, self._d_out_p), jnp.float32)
        w2_p = w2_p.at[:, :d_out].set(self.w2)
        b2_p = jnp.zeros((1, self._d_out_p), jnp.float32)
        b2_p = b2_p.at[:, :d_out].set(self.b2)

        self._w1_k = self.w1.astype(jnp.bfloat16)     # (state_dim, hidden_dim)
        self._b1_k = self.b1                           # (1, hidden_dim) f32
        self._w2_k = w2_p.astype(jnp.bfloat16)         # (hidden_dim, d_out_p)
        self._b2_k = b2_p                              # (1, d_out_p) f32

    def forward(self, joint_positions: jnp.ndarray) -> jnp.ndarray:
        """joint_positions: (B, state_dim) f32 -> (B, horizon, action_dim) f32."""
        B = joint_positions.shape[0]
        x = joint_positions.astype(jnp.float32)   # no-op for f32 inputs
        y = _fused_mlp(
            x, self._w1_k, self._b1_k, self._w2_k, self._b2_k,
            tile_b=self.batch_tile,
        )
        if self._d_out_p != self._d_out:
            y = y[:, : self._d_out]
        return y.reshape(B, self.output_prediction_horizon, self.action_dim)

    # TODO(synk): training_step / configure_optimizers / tokenize_text are
    # abstract training-harness hooks with no kernel-level compute to translate.

    @staticmethod
    def get_supported_input_data_types() -> List[str]:
        return list(NeuracoreModelPallas.SUPPORTED_INPUT_TYPES)

    @staticmethod
    def get_supported_output_data_types() -> List[str]:
        return list(NeuracoreModelPallas.SUPPORTED_OUTPUT_TYPES)


# ----------------------------------------------------------------------------
# Main
# ----------------------------------------------------------------------------
if __name__ == "__main__":
    B, STATE_DIM, ACTION_DIM, HORIZON, HIDDEN = 2, 32, 16, 8, 32

    model = NeuracoreModelPallas(
        input_data_types=["JOINT_POSITIONS"],
        output_data_types=["JOINT_TARGET_POSITIONS"],
        dataset_data_types=["JOINT_POSITIONS", "JOINT_TARGET_POSITIONS"],
        state_dim=STATE_DIM,
        action_dim=ACTION_DIM,
        output_prediction_horizon=HORIZON,
        hidden_dim=HIDDEN,
    )

    key = jax.random.PRNGKey(0)
    x = jax.random.normal(key, (B, STATE_DIM), jnp.float32)

    out = model.forward(x)
    out = jax.block_until_ready(out)

    # Cross-check against a pure-JAX f32 reference of the same forward.
    # (bf16 x/weights in the kernel -> loosened tolerance.)
    ref = jnp.maximum(x @ model.w1 + model.b1, 0.0) @ model.w2 + model.b2
    ref = ref.reshape(B, HORIZON, ACTION_DIM)
    assert out.shape == (B, HORIZON, ACTION_DIM)
    assert jnp.allclose(out, ref, atol=1e-2, rtol=1e-2), (
        float(jnp.max(jnp.abs(out - ref)))
    )

    print("KERNEL_OK")
</pallas_src>

<mosaic_0001>
module attributes {stable_mosaic.version = 11 : i64} {
  func.func @_mlp_kernel(%arg0: i32, %arg1: memref<2x32xf32, #tpu.memory_space<vmem>>, %arg2: memref<32x32xbf16, #tpu.memory_space<vmem>>, %arg3: memref<1x32xf32, #tpu.memory_space<vmem>>, %arg4: memref<32x128xbf16, #tpu.memory_space<vmem>>, %arg5: memref<1x128xf32, #tpu.memory_space<vmem>>, %arg6: memref<2x128xf32, #tpu.memory_space<vmem>>) attributes {dimension_semantics = [#tpu.dimension_semantics<parallel>], iteration_bounds = array<i64: 1>, scalar_prefetch = 0 : i64, scratch_operands = 0 : i64, tpu.core_type = #tpu.core_type<tc>, window_params = [{transform_indices = @transform_0, window_bounds = array<i64: 2, 32>}, {pipeline_mode = #tpu.pipeline_mode<synchronous>, transform_indices = @transform_1, window_bounds = array<i64: 32, 32>}, {pipeline_mode = #tpu.pipeline_mode<synchronous>, transform_indices = @transform_2, window_bounds = array<i64: 1, 32>}, {pipeline_mode = #tpu.pipeline_mode<synchronous>, transform_indices = @transform_3, window_bounds = array<i64: 32, 128>}, {pipeline_mode = #tpu.pipeline_mode<synchronous>, transform_indices = @transform_4, window_bounds = array<i64: 1, 128>}, {transform_indices = @transform_5, window_bounds = array<i64: 2, 128>}]} {
    %c0 = arith.constant 0 : index
    %c0_0 = arith.constant 0 : index
    %0 = vector.load %arg1[%c0, %c0_0] : memref<2x32xf32, #tpu.memory_space<vmem>>, vector<2x32xf32>
    %1 = arith.truncf %0 : vector<2x32xf32> to vector<2x32xbf16>
    %c0_1 = arith.constant 0 : index
    %c0_2 = arith.constant 0 : index
    %2 = vector.load %arg2[%c0_1, %c0_2] : memref<32x32xbf16, #tpu.memory_space<vmem>>, vector<32x32xbf16>
    %cst = arith.constant dense<0.000000e+00> : vector<2x32xf32>
    %3 = tpu.matmul %1, %2, %cst {dimension_numbers = #tpu.dot_dimension_numbers<[1], [0], [0], [1], [0, 0, 1, 1], [], []>} : vector<2x32xbf16>, vector<32x32xbf16>, vector<2x32xf32> -> vector<2x32xf32>
    %c0_3 = arith.constant 0 : index
    %c0_4 = arith.constant 0 : index
    %4 = vector.load %arg3[%c0_3, %c0_4] : memref<1x32xf32, #tpu.memory_space<vmem>>, vector<1x32xf32>
    %5 = vector.broadcast %4 : vector<1x32xf32> to vector<2x32xf32>
    %6 = arith.addf %3, %5 : vector<2x32xf32>
    %cst_5 = arith.constant 0.000000e+00 : f32
    %7 = vector.broadcast %cst_5 : f32 to vector<2x32xf32>
    %8 = arith.maximumf %6, %7 : vector<2x32xf32>
    %9 = arith.truncf %8 : vector<2x32xf32> to vector<2x32xbf16>
    %c0_6 = arith.constant 0 : index
    %c0_7 = arith.constant 0 : index
    %10 = vector.load %arg4[%c0_6, %c0_7] : memref<32x128xbf16, #tpu.memory_space<vmem>>, vector<32x128xbf16>
    %cst_8 = arith.constant dense<0.000000e+00> : vector<2x128xf32>
    %11 = tpu.matmul %9, %10, %cst_8 {dimension_numbers = #tpu.dot_dimension_numbers<[1], [0], [0], [1], [0, 0, 1, 1], [], []>} : vector<2x32xbf16>, vector<32x128xbf16>, vector<2x128xf32> -> vector<2x128xf32>
    %c0_9 = arith.constant 0 : index
    %c0_10 = arith.constant 0 : index
    %12 = vector.load %arg5[%c0_9, %c0_10] : memref<1x128xf32, #tpu.memory_space<vmem>>, vector<1x128xf32>
    %13 = vector.broadcast %12 : vector<1x128xf32> to vector<2x128xf32>
    %14 = arith.addf %11, %13 : vector<2x128xf32>
    %c0_11 = arith.constant 0 : index
    %c0_12 = arith.constant 0 : index
    %15 = vector.load %arg6[%c0_11, %c0_12] : memref<2x128xf32, #tpu.memory_space<vmem>>, vector<2x128xf32>
    tpu.vector_store %arg6[%c0_11, %c0_12], %14 {strides = array<i32>} : memref<2x128xf32, #tpu.memory_space<vmem>>, vector<2x128xf32>,
    return
  }
  func.func @transform_0(%arg0: i32) -> (i32, i32) {
    %c0_i32 = arith.constant 0 : i32
    %c0_i32_0 = arith.constant 0 : i32
    return %arg0, %c0_i32 : i32, i32
  }
  func.func @transform_1(%arg0: i32) -> (i32, i32) {
    %c0_i32 = arith.constant 0 : i32
    %c0_i32_0 = arith.constant 0 : i32
    %c0_i32_1 = arith.constant 0 : i32
    return %c0_i32, %c0_i32_0 : i32, i32
  }
  func.func @transform_2(%arg0: i32) -> (i32, i32) {
    %c0_i32 = arith.constant 0 : i32
    %c0_i32_0 = arith.constant 0 : i32
    %c0_i32_1 = arith.constant 0 : i32
    return %c0_i32, %c0_i32_0 : i32, i32
  }
  func.func @transform_3(%arg0: i32) -> (i32, i32) {
    %c0_i32 = arith.constant 0 : i32
    %c0_i32_0 = arith.constant 0 : i32
    %c0_i32_1 = arith.constant 0 : i32
    return %c0_i32, %c0_i32_0 : i32, i32
  }
  func.func @transform_4(%arg0: i32) -> (i32, i32) {
    %c0_i32 = arith.constant 0 : i32
    %c0_i32_0 = arith.constant 0 : i32
    %c0_i32_1 = arith.constant 0 : i32
    return %c0_i32, %c0_i32_0 : i32, i32
  }
  func.func @transform_5(%arg0: i32) -> (i32, i32) {
    %c0_i32 = arith.constant 0 : i32
    %c0_i32_0 = arith.constant 0 : i32
    return %arg0, %c0_i32 : i32, i32
  }
}

</mosaic_0001>

<llo_original>
// kernel: tpu_custom_call.1
$region0: #{tpu_custom_call.1}
  #allocation0 [shape = 'u32[]', space=smem, size = 0x4, offset = 0x4, fixed_abs, tag = 'smem constant byte address 0x4 - core index']
  #allocation1 [shape = 'u32[72,128]{1,0:T(1,128)}', space=vmem, size = 0x9000, scoped, tag = 'internal scratch']
  %s0 = inlined_call_operand.hbm [shape: f32[2,32], index: 0, kind: input, shape index: {}]
  %s1 = inlined_call_operand.hbm [shape: bf16[32,32], index: 1, kind: input, shape index: {}]
  %s2 = inlined_call_operand.vmem [shape: f32[1,32], index: 2, kind: input, shape index: {}]
  %s3 = inlined_call_operand.hbm [shape: bf16[32,128], index: 3, kind: input, shape index: {}]
  %s4 = inlined_call_operand.vmem [shape: f32[1,128], index: 4, kind: input, shape index: {}]
  %s5 = inlined_call_operand.hbm [shape: f32[2,128], index: 5, kind: output, shape index: {}]
  %s6 = sld [smem:[#allocation0]]
  $region42: #{tpu_custom_call.1} parent=0
    _
  %s8 = ssub.s32 1, %s6
  %s9 = scalar_select 0, %s8, %s6
  $region1: #{tpu_custom_call.1} parent=0
    #allocation2 [shape = 'u8[1024]{0}', space=vmem, size = 0x400, scoped, tag = 'input window, operand 0, single buffered']
    #allocation3 [shape = 's32[1]{0}', space=sflag, size = 0x4, scoped, tag = 'scoped memory for tpu_custom_call.1']
    #allocation4 [shape = 's32[1]{0}', space=sflag, size = 0x4, scoped, tag = 'scoped memory for tpu_custom_call.1']
    #allocation5 [shape = 'u8[8192]{0}', space=vmem, size = 0x2000, scoped, tag = 'input window, operand 1, single buffered']
    #allocation6 [shape = 's32[1]{0}', space=sflag, size = 0x4, scoped, tag = 'scoped memory for tpu_custom_call.1']
    #allocation7 [shape = 'u8[8192]{0}', space=vmem, size = 0x2000, scoped, tag = 'input window, operand 3, single buffered']
    #allocation8 [shape = 'u8[1024]{0}', space=vmem, size = 0x400, scoped, tag = 'output window, operand 0, single buffered']
    %10 = vsyncpa [#allocation3], 0
    %11 = vsyncpa [#allocation6], 0
    %12 = vsyncpa [#allocation4], 0
    // Predicated region
    $region2: #{tpu_custom_call.1} parent=1 // pred_check
      _
    $region3: #{tpu_custom_call.1} parent=1 // pred_check_branch
      %14 = sbr.rel (0) target = $region5
    $region4: #{tpu_custom_call.1} parent=1 // pred_region
      %16 = vsyncadd [#allocation3], 0
      %s18 = sshll.u32 %s0, 4
      %s19 = int_to_ptr.hbm [resolvable:$true] %s18
      %s20 = sshll.u32 [#allocation2], 4
      %s21 = int_to_ptr.vmem [resolvable:$true] %s20
      %23 = dma.hbm_to_vmem [thread:$0]  %s19, 32, %s21, [#allocation3]
    $region5: #{tpu_custom_call.1} parent=1 // pred_fallthru
      _
    // Predicated region
    $region6: #{tpu_custom_call.1} parent=1 // pred_check
      _
    $region7: #{tpu_custom_call.1} parent=1 // pred_check_branch
      %25 = sbr.rel (0) target = $region9
    $region8: #{tpu_custom_call.1} parent=1 // pred_region
      %27 = vsyncadd [#allocation6], 0
      %s28 = sshll.u32 %s1, 4
      %s29 = int_to_ptr.hbm [resolvable:$true] %s28
      %s30 = sshll.u32 [#allocation5], 4
      %s31 = int_to_ptr.vmem [resolvable:$true] %s30
      %36 = dma.hbm_to_vmem [thread:$0]  %s29, 256, %s31, [#allocation6], 64, 64, 4
    $region9: #{tpu_custom_call.1} parent=1 // pred_fallthru
      _
    // Predicated region
    $region10: #{tpu_custom_call.1} parent=1 // pred_check
      _
    $region11: #{tpu_custom_call.1} parent=1 // pred_check_branch
      %38 = sbr.rel (0) target = $region13
    $region12: #{tpu_custom_call.1} parent=1 // pred_region
      _
    $region13: #{tpu_custom_call.1} parent=1 // pred_fallthru
      _
    // Predicated region
    $region14: #{tpu_custom_call.1} parent=1 // pred_check
      _
    $region15: #{tpu_custom_call.1} parent=1 // pred_check_branch
      %40 = sbr.rel (0) target = $region17
    $region16: #{tpu_custom_call.1} parent=1 // pred_region
      %42 = vsyncadd [#allocation6], 0
      %s43 = sshll.u32 %s3, 4
      %s44 = int_to_ptr.hbm [resolvable:$true] %s43
      %s45 = sshll.u32 [#allocation7], 4
      %s46 = int_to_ptr.vmem [resolvable:$true] %s45
      %51 = dma.hbm_to_vmem [thread:$0]  %s44, 256, %s46, [#allocation6], 64, 64, 4
    $region17: #{tpu_custom_call.1} parent=1 // pred_fallthru
      _
    // Predicated region
    $region18: #{tpu_custom_call.1} parent=1 // pred_check
      _
    $region19: #{tpu_custom_call.1} parent=1 // pred_check_branch
      %53 = sbr.rel (0) target = $region21
    $region20: #{tpu_custom_call.1} parent=1 // pred_region
      _
    $region21: #{tpu_custom_call.1} parent=1 // pred_fallthru
      _
    // Predicated region
    $region22: #{tpu_custom_call.1} parent=1 // pred_check
      _
    $region23: #{tpu_custom_call.1} parent=1 // pred_check_branch
      %55 = sbr.rel (0) target = $region25
    $region24: #{tpu_custom_call.1} parent=1 // pred_region
      %57 = dma.done [#allocation3], 32
    $region25: #{tpu_custom_call.1} parent=1 // pred_fallthru
      _
    // Predicated region
    $region26: #{tpu_custom_call.1} parent=1 // pred_check
      _
    $region27: #{tpu_custom_call.1} parent=1 // pred_check_branch
      %59 = sbr.rel (0) target = $region29
    $region28: #{tpu_custom_call.1} parent=1 // pred_region
      %61 = dma.done [#allocation6], 256
    $region29: #{tpu_custom_call.1} parent=1 // pred_fallthru
      _
    // Predicated region
    $region30: #{tpu_custom_call.1} parent=1 // pred_check
      _
    $region31: #{tpu_custom_call.1} parent=1 // pred_check_branch
      %63 = sbr.rel (0) target = $region33
    $region32: #{tpu_custom_call.1} parent=1 // pred_region
      %65 = dma.done [#allocation6], 256
    $region33: #{tpu_custom_call.1} parent=1 // pred_fallthru
      _
    %v67 = vld [vmem:[#allocation2] sm:$0x3]
    %v68 = vpack.c.bf16 %v67, %v67
    %v69 = vld [vmem:[#allocation5] sm:$0xf]
    %v70 = vld [vmem:[#allocation5 + $0x4] sm:$0xf]
    %v71 = vld [vmem:[#allocation5 + $0x8] sm:$0xf]
    %v72 = vld [vmem:[#allocation5 + $0xc] sm:$0xf]
    %v73 = vld [vmem:[%s2] sm:$0x1]
    %v75 = vperm.slane %v73, 0
    %v81 = vunpack.c.l.b16 %v69
    %v82 = vunpack.c.l.b16 %v70
    %v83 = vunpack.c.l.b16 %v71
    %v84 = vunpack.c.l.b16 %v72
    %v85 = vpack.c.b16 %v82, %v81
    %v86 = vpack.c.b16 %v84, %v83
    %vm89 = vcmask 261120
    %v91 = vsel %vm89, %v68, 0
    %93 = vmatpush.bf16.msra.mxu0 0
    %94 = vmatpush.bf16.msra.mxu0 0
    %95 = vmatpush.bf16.msra.mxu0 0
    %96 = vmatpush.bf16.msra.mxu0 0
    %97 = vmatpush.bf16.msra.mxu0 0
    %98 = vmatpush.bf16.msra.mxu0 0
    %99 = vmatpush.bf16.msra.mxu0 %v86
    %100 = vmatpush.bf16.msra.mxu0 %v85
    %101 = vmatmul.bf16.gmra.mxu0 %v91
    %v102 = vpop.f32.mrf.mxu0
    %v103 = vadd.f32 %v75, %v102
    %v104 = vpop.f32.mrf.mxu0
    %105 = vdwg.mxu0
    %v106 = vmax.f32 %v103, 0.0
    %v107 = vpack.c.bf16 %v106, %v106
    %v108 = vld [vmem:[#allocation7] sm:$0xf]
    %v109 = vld [vmem:[#allocation7 + $0x4] sm:$0xf]
    %v110 = vld [vmem:[#allocation7 + $0x8] sm:$0xf]
    %v111 = vld [vmem:[#allocation7 + $0xc] sm:$0xf]
    %v112 = vld [vmem:[%s4] sm:$0x1]
    %v114 = vperm.slane %v112, 0
    %v120 = vunpack.c.l.b16 %v108
    %v121 = vunpack.c.l.b16 %v109
    %v122 = vunpack.c.l.b16 %v110
    %v123 = vunpack.c.l.b16 %v111
    %v124 = vpack.c.b16 %v121, %v120
    %v125 = vpack.c.b16 %v123, %v122
    %v129 = vsel %vm89, %v107, 0
    %131 = vmatpush.bf16.msra.mxu0 0
    %132 = vmatpush.bf16.msra.mxu0 0
    %133 = vmatpush.bf16.msra.mxu0 0
    %134 = vmatpush.bf16.msra.mxu0 0
    %135 = vmatpush.bf16.msra.mxu0 0
    %136 = vmatpush.bf16.msra.mxu0 0
    %137 = vmatpush.bf16.msra.mxu0 %v125
    %138 = vmatpush.bf16.msra.mxu0 %v124
    %139 = vmatmul.bf16.gmra.mxu0 %v129
    %v140 = vpop.f32.mrf.mxu0
    %v141 = vadd.f32 %v114, %v140
    %v142 = vpop.f32.mrf.mxu0
    %143 = vdwg.mxu0
    %144 = vst [vmem:[#allocation8] sm:$0x3] %v141
    // Predicated region
    $region34: #{tpu_custom_call.1} parent=1 // pred_check
      _
    $region35: #{tpu_custom_call.1} parent=1 // pred_check_branch
      %146 = sbr.rel (0) target = $region37
    $region36: #{tpu_custom_call.1} parent=1 // pred_region
      %148 = vsyncadd [#allocation4], 0
      %s150 = sshll.u32 [#allocation8], 4
      %s151 = int_to_ptr.vmem [resolvable:$true] %s150
      %s152 = sshll.u32 %s5, 4
      %s153 = int_to_ptr.hbm [resolvable:$true] %s152
      %155 = dma.vmem_to_hbm [thread:$0]  %s151, 32, %s153, [#allocation4]
    $region37: #{tpu_custom_call.1} parent=1 // pred_fallthru
      _
    // Predicated region
    $region38: #{tpu_custom_call.1} parent=1 // pred_check
      _
    $region39: #{tpu_custom_call.1} parent=1 // pred_check_branch
      %157 = sbr.rel (0) target = $region41
    $region40: #{tpu_custom_call.1} parent=1 // pred_region
      %159 = dma.done [#allocation4], 32
    $region41: #{tpu_custom_call.1} parent=1 // pred_fallthru
      _
    %160 = vsyncpa [#allocation3], 1
    %161 = vsyncpa [#allocation6], 1
    %162 = vsyncpa [#allocation4], 1

</llo_original>
